<compile_context>
chip_gen: v6e
topology: v6e:2x2x1
jax: 0.10.0
libtpu: 0.0.40
codegen_flags: <defaults>
</compile_context>

<pallas_src>
import jax
import jax.numpy as jnp
from jax import lax
from jax.experimental import pallas as pl
from jax.experimental.pallas import tpu as pltpu


def _make_recog_kernel(Bt, C_mid, S2, chunk):
    """Build the fused conv+ReLU+GAP+FC+normalize kernel for static tile sizes."""
    # Static spatial chunk schedule (caps the live (C_mid, chunk) intermediate).
    spans = []
    s0 = 0
    while s0 < S2:
        w = min(chunk, S2 - s0)
        spans.append((s0, w))
        s0 += w

    def kernel(x_ref, w1t_ref, b1_ref, w2_ref, b2_ref, o_ref):
        # x_ref block: (Bt, C, S2) bf16 -- channels on sublanes, spatial on lanes.
        w1t = w1t_ref[...]                                   # (C_mid, C) bf16
        b1 = b1_ref[...]                                     # (C_mid, 1) f32

        rows = []
        for b in range(Bt):                                  # short unrolled batch loop
            acc = jnp.zeros((C_mid, 1), jnp.float32)
            for start, width in spans:                       # spatial chunking
                xc = x_ref[b, :, start:start + width]        # (C, width) bf16
                # 1x1 conv over channels == MXU matmul (2*x-1 already folded in).
                h = jnp.dot(w1t, xc, preferred_element_type=jnp.float32)
                h = jnp.maximum(h + b1, 0.0)                 # bias + ReLU
                # Global sum pool chunk: XLU lane reduce (mean folded into w2).
                acc = acc + jnp.sum(h, axis=-1, keepdims=True)   # (C_mid, 1)
            # FC head for this row: acc^T @ w2 expressed as a transposed-LHS
            # dot_general (MXU handles the transposed operand natively).
            f_row = lax.dot_general(
                acc, w2_ref[...],
                dimension_numbers=(((0,), (0,)), ((), ())),
                preferred_element_type=jnp.float32)          # (1, D)
            rows.append(f_row)

        f = jnp.concatenate(rows, axis=0) if Bt > 1 else rows[0]   # (Bt, D)
        f = f + b2_ref[...]                                        # (Bt, D)

        # F.normalize(p=2, dim=-1, eps=1e-12): x / max(||x||, 1e-12)
        #   == x * rsqrt(max(||x||^2, 1e-24))   (single EUP op, no VPU divide)
        ss = jnp.sum(f * f, axis=-1, keepdims=True)
        o_ref[...] = f * lax.rsqrt(jnp.maximum(ss, 1e-24))   # lane-dense (Bt, D) store

    return kernel


def _nearest_resize_nchw(image_nchw, out_size):
    """PyTorch F.interpolate(mode='nearest'): src = floor(dst * in/out), computed
    in exact integer arithmetic and applied as one combined gather."""
    _, _, H, W = image_nchw.shape
    idx_h = (jnp.arange(out_size, dtype=jnp.int32) * H) // out_size
    idx_w = (jnp.arange(out_size, dtype=jnp.int32) * W) // out_size
    return image_nchw[:, :, idx_h[:, None], idx_w[None, :]]            # [B, C, S, S]


def prepare_params(params, input_size):
    """Host-side folding of the 2*x-1 preprocess and the GAP mean into weights."""
    w1, b1, w2, b2 = params
    # conv(2x - 1; w1, b1) == conv(x; 2*w1, b1 - sum_c w1)
    w1t = jnp.transpose(2.0 * w1).astype(jnp.bfloat16)                 # (C_mid, C) bf16
    b1_col = jnp.transpose(b1 - jnp.sum(w1, axis=0, keepdims=True))    # (C_mid, 1) f32
    # mean over S*S positions folded into the FC weights.
    w2_s = (w2 / float(input_size * input_size)).astype(jnp.float32)   # (C_mid, D)
    return w1t, b1_col, w2_s, b2.astype(jnp.float32)


def recog_net_wrapper_forward(image_ori_nchw, params, input_size,
                              *, bt_max=8, spatial_chunk=2048):
    """image_ori_nchw: [B, C, H, W] float32. Returns L2-normalized embedding [B, D]."""
    w1t, b1_col, w2_s, b2 = prepare_params(params, input_size)
    B, C, H, W = image_ori_nchw.shape
    S = input_size
    S2 = S * S
    C_mid = w1t.shape[0]
    D = w2_s.shape[1]

    # Glue: nearest resize (skipped when it is the identity) + flatten spatial +
    # bf16 cast; gather and cast are adjacent so XLA fuses the pre-pass.
    if (H, W) == (S, S):
        resized = image_ori_nchw
    else:
        resized = _nearest_resize_nchw(image_ori_nchw, S)              # [B, C, S, S]
    x = resized.reshape(B, C, S2).astype(jnp.bfloat16)                 # [B, C, S*S]

    Bt = min(B, bt_max)                      # batch elements per grid step
    nb = pl.cdiv(B, Bt)
    chunk = min(spatial_chunk, S2)           # spatial lanes processed per inner step

    kernel = _make_recog_kernel(Bt, C_mid, S2, chunk)

    feat = pl.pallas_call(
        kernel,
        out_shape=jax.ShapeDtypeStruct((B, D), jnp.float32),
        grid=(nb,),
        in_specs=[
            pl.BlockSpec((Bt, C, S2), lambda i: (i, 0, 0)),
            pl.BlockSpec((C_mid, C), lambda i: (0, 0)),
            pl.BlockSpec((C_mid, 1), lambda i: (0, 0)),
            pl.BlockSpec((C_mid, D), lambda i: (0, 0)),
            pl.BlockSpec((1, D), lambda i: (0, 0)),
        ],
        out_specs=pl.BlockSpec((Bt, D), lambda i: (i, 0)),
        compiler_params=pltpu.CompilerParams(
            dimension_semantics=("parallel",)),
    )(x, w1t, b1_col, w2_s, b2)

    return feat


def init_params(key, c_in=3, c_mid=128, emb_dim=128):
    k1, k2, k3, k4 = jax.random.split(key, 4)
    w1 = jax.random.normal(k1, (c_in, c_mid), jnp.float32) * 0.1
    b1 = jax.random.normal(k2, (1, c_mid), jnp.float32) * 0.01
    w2 = jax.random.normal(k3, (c_mid, emb_dim), jnp.float32) * 0.1
    b2 = jax.random.normal(k4, (1, emb_dim), jnp.float32) * 0.01
    return (w1, b1, w2, b2)


def _reference_forward(image_ori, params, input_size):
    """Pure-JAX f32 reference matching the PyTorch module semantics."""
    w1, b1, w2, b2 = params
    B, C, H, W = image_ori.shape
    S = input_size
    img = image_ori if (H, W) == (S, S) else _nearest_resize_nchw(image_ori, S)
    x = (2.0 * img - 1.0).reshape(B, C, S * S)                         # preprocess
    h = jnp.maximum(jnp.einsum('cm,bcs->bms', w1, x) + b1.T[None], 0.0)
    g = jnp.mean(h, axis=-1)                                           # GAP
    f = g @ w2 + b2                                                    # FC head
    n = jnp.maximum(jnp.linalg.norm(f, axis=-1, keepdims=True), 1e-12)
    return f / n


if __name__ == "__main__":
    key = jax.random.PRNGKey(0)
    kx, kp = jax.random.split(key)

    B, C, H, W = 2, 3, 16, 16
    INPUT_SIZE = 8          # small stand-in for the module's default 112
    EMB_DIM = 128

    image_ori = jax.random.uniform(kx, (B, C, H, W), jnp.float32)   # NCHW like PyTorch
    params = init_params(kp, c_in=C, c_mid=128, emb_dim=EMB_DIM)

    feat = recog_net_wrapper_forward(image_ori, params, INPUT_SIZE)
    feat = jax.block_until_ready(feat)

    assert feat.shape == (B, EMB_DIM)
    # Embeddings must be unit-norm after F.normalize semantics.
    norms = jnp.linalg.norm(feat, axis=-1)
    assert bool(jnp.all(jnp.abs(norms - 1.0) < 1e-4))
    # Tolerance check vs. pure-JAX f32 reference (bf16 image/w1 stream).
    ref = _reference_forward(image_ori, params, INPUT_SIZE)
    assert bool(jnp.max(jnp.abs(feat - ref)) < 2e-2)

    print("KERNEL_OK")
</pallas_src>

<mosaic_0001>
module attributes {stable_mosaic.version = 11 : i64} {
  func.func @kernel(%arg0: i32, %arg1: memref<2x3x64xbf16, #tpu.memory_space<vmem>>, %arg2: memref<128x3xbf16, #tpu.memory_space<vmem>>, %arg3: memref<128x1xf32, #tpu.memory_space<vmem>>, %arg4: memref<128x128xf32, #tpu.memory_space<vmem>>, %arg5: memref<1x128xf32, #tpu.memory_space<vmem>>, %arg6: memref<2x128xf32, #tpu.memory_space<vmem>>) attributes {dimension_semantics = [#tpu.dimension_semantics<parallel>], iteration_bounds = array<i64: 1>, scalar_prefetch = 0 : i64, scratch_operands = 0 : i64, tpu.core_type = #tpu.core_type<tc>, window_params = [{transform_indices = @transform_0, window_bounds = array<i64: 2, 3, 64>}, {pipeline_mode = #tpu.pipeline_mode<synchronous>, transform_indices = @transform_1, window_bounds = array<i64: 128, 3>}, {pipeline_mode = #tpu.pipeline_mode<synchronous>, transform_indices = @transform_2, window_bounds = array<i64: 128, 1>}, {pipeline_mode = #tpu.pipeline_mode<synchronous>, transform_indices = @transform_3, window_bounds = array<i64: 128, 128>}, {pipeline_mode = #tpu.pipeline_mode<synchronous>, transform_indices = @transform_4, window_bounds = array<i64: 1, 128>}, {transform_indices = @transform_5, window_bounds = array<i64: 2, 128>}]} {
    %c0 = arith.constant 0 : index
    %c0_0 = arith.constant 0 : index
    %0 = vector.load %arg2[%c0, %c0_0] : memref<128x3xbf16, #tpu.memory_space<vmem>>, vector<128x3xbf16>
    %c0_1 = arith.constant 0 : index
    %c0_2 = arith.constant 0 : index
    %1 = vector.load %arg3[%c0_1, %c0_2] : memref<128x1xf32, #tpu.memory_space<vmem>>, vector<128x1xf32>
    %cst = arith.constant 0.000000e+00 : f32
    %2 = vector.broadcast %cst : f32 to vector<128x1xf32>
    %c0_3 = arith.constant 0 : index
    %c0_4 = arith.constant 0 : index
    %c0_5 = arith.constant 0 : index
    %3 = vector.load %arg1[%c0_3, %c0_4, %c0_5] : memref<2x3x64xbf16, #tpu.memory_space<vmem>>, vector<1x3x64xbf16>
    %4 = vector.shape_cast %3 : vector<1x3x64xbf16> to vector<3x64xbf16>
    %cst_6 = arith.constant dense<0.000000e+00> : vector<128x64xf32>
    %5 = tpu.matmul %0, %4, %cst_6 {dimension_numbers = #tpu.dot_dimension_numbers<[1], [0], [0], [1], [0, 0, 1, 1], [], []>} : vector<128x3xbf16>, vector<3x64xbf16>, vector<128x64xf32> -> vector<128x64xf32>
    %6 = vector.broadcast %1 : vector<128x1xf32> to vector<128x64xf32>
    %7 = arith.addf %5, %6 : vector<128x64xf32>
    %cst_7 = arith.constant 0.000000e+00 : f32
    %8 = vector.broadcast %cst_7 : f32 to vector<128x64xf32>
    %9 = arith.maximumf %7, %8 : vector<128x64xf32>
    %cst_8 = arith.constant dense<0.000000e+00> : vector<128xf32>
    %10 = vector.multi_reduction <add>, %9, %cst_8 [1] : vector<128x64xf32> to vector<128xf32>
    %11 = vector.shape_cast %10 : vector<128xf32> to vector<128x1xf32>
    %12 = arith.addf %2, %11 : vector<128x1xf32>
    %c0_9 = arith.constant 0 : index
    %c0_10 = arith.constant 0 : index
    %13 = vector.load %arg4[%c0_9, %c0_10] : memref<128x128xf32, #tpu.memory_space<vmem>>, vector<128x128xf32>
    %cst_11 = arith.constant dense<0.000000e+00> : vector<1x128xf32>
    %14 = tpu.matmul %12, %13, %cst_11 {dimension_numbers = #tpu.dot_dimension_numbers<[0], [0], [1], [1], [0, 1, 1, 1], [], []>} : vector<128x1xf32>, vector<128x128xf32>, vector<1x128xf32> -> vector<1x128xf32>
    %cst_12 = arith.constant 0.000000e+00 : f32
    %15 = vector.broadcast %cst_12 : f32 to vector<128x1xf32>
    %c1 = arith.constant 1 : index
    %c0_13 = arith.constant 0 : index
    %c0_14 = arith.constant 0 : index
    %16 = vector.load %arg1[%c1, %c0_13, %c0_14] : memref<2x3x64xbf16, #tpu.memory_space<vmem>>, vector<1x3x64xbf16>
    %17 = vector.shape_cast %16 : vector<1x3x64xbf16> to vector<3x64xbf16>
    %cst_15 = arith.constant dense<0.000000e+00> : vector<128x64xf32>
    %18 = tpu.matmul %0, %17, %cst_15 {dimension_numbers = #tpu.dot_dimension_numbers<[1], [0], [0], [1], [0, 0, 1, 1], [], []>} : vector<128x3xbf16>, vector<3x64xbf16>, vector<128x64xf32> -> vector<128x64xf32>
    %19 = vector.broadcast %1 : vector<128x1xf32> to vector<128x64xf32>
    %20 = arith.addf %18, %19 : vector<128x64xf32>
    %cst_16 = arith.constant 0.000000e+00 : f32
    %21 = vector.broadcast %cst_16 : f32 to vector<128x64xf32>
    %22 = arith.maximumf %20, %21 : vector<128x64xf32>
    %cst_17 = arith.constant dense<0.000000e+00> : vector<128xf32>
    %23 = vector.multi_reduction <add>, %22, %cst_17 [1] : vector<128x64xf32> to vector<128xf32>
    %24 = vector.shape_cast %23 : vector<128xf32> to vector<128x1xf32>
    %25 = arith.addf %15, %24 : vector<128x1xf32>
    %c0_18 = arith.constant 0 : index
    %c0_19 = arith.constant 0 : index
    %26 = vector.load %arg4[%c0_18, %c0_19] : memref<128x128xf32, #tpu.memory_space<vmem>>, vector<128x128xf32>
    %cst_20 = arith.constant dense<0.000000e+00> : vector<1x128xf32>
    %27 = tpu.matmul %25, %26, %cst_20 {dimension_numbers = #tpu.dot_dimension_numbers<[0], [0], [1], [1], [0, 1, 1, 1], [], []>} : vector<128x1xf32>, vector<128x128xf32>, vector<1x128xf32> -> vector<1x128xf32>
    %28 = tpu.concatenate %14, %27 in 0 : vector<1x128xf32>, vector<1x128xf32> -> vector<2x128xf32>
    %c0_21 = arith.constant 0 : index
    %c0_22 = arith.constant 0 : index
    %29 = vector.load %arg5[%c0_21, %c0_22] : memref<1x128xf32, #tpu.memory_space<vmem>>, vector<1x128xf32>
    %30 = vector.broadcast %29 : vector<1x128xf32> to vector<2x128xf32>
    %31 = arith.addf %28, %30 : vector<2x128xf32>
    %32 = arith.mulf %31, %31 : vector<2x128xf32>
    %cst_23 = arith.constant dense<0.000000e+00> : vector<2xf32>
    %33 = vector.multi_reduction <add>, %32, %cst_23 [1] : vector<2x128xf32> to vector<2xf32>
    %34 = vector.shape_cast %33 : vector<2xf32> to vector<2x1xf32>
    %cst_24 = arith.constant 1.000000e-24 : f32
    %35 = vector.broadcast %cst_24 : f32 to vector<2x1xf32>
    %36 = arith.maximumf %34, %35 : vector<2x1xf32>
    %37 = math.rsqrt %36 : vector<2x1xf32>
    %38 = vector.broadcast %37 : vector<2x1xf32> to vector<2x128xf32>
    %39 = arith.mulf %31, %38 : vector<2x128xf32>
    %c0_25 = arith.constant 0 : index
    %c0_26 = arith.constant 0 : index
    %40 = vector.load %arg6[%c0_25, %c0_26] : memref<2x128xf32, #tpu.memory_space<vmem>>, vector<2x128xf32>
    tpu.vector_store %arg6[%c0_25, %c0_26], %39 {strides = array<i32>} : memref<2x128xf32, #tpu.memory_space<vmem>>, vector<2x128xf32>,
    return
  }
  func.func @transform_0(%arg0: i32) -> (i32, i32, i32) {
    %c0_i32 = arith.constant 0 : i32
    %c0_i32_0 = arith.constant 0 : i32
    %c0_i32_1 = arith.constant 0 : i32
    return %arg0, %c0_i32, %c0_i32_0 : i32, i32, i32
  }
  func.func @transform_1(%arg0: i32) -> (i32, i32) {
    %c0_i32 = arith.constant 0 : i32
    %c0_i32_0 = arith.constant 0 : i32
    %c0_i32_1 = arith.constant 0 : i32
    return %c0_i32, %c0_i32_0 : i32, i32
  }
  func.func @transform_2(%arg0: i32) -> (i32, i32) {
    %c0_i32 = arith.constant 0 : i32
    %c0_i32_0 = arith.constant 0 : i32
    %c0_i32_1 = arith.constant 0 : i32
    return %c0_i32, %c0_i32_0 : i32, i32
  }
  func.func @transform_3(%arg0: i32) -> (i32, i32) {
    %c0_i32 = arith.constant 0 : i32
    %c0_i32_0 = arith.constant 0 : i32
    %c0_i32_1 = arith.constant 0 : i32
    return %c0_i32, %c0_i32_0 : i32, i32
  }
  func.func @transform_4(%arg0: i32) -> (i32, i32) {
    %c0_i32 = arith.constant 0 : i32
    %c0_i32_0 = arith.constant 0 : i32
    %c0_i32_1 = arith.constant 0 : i32
    return %c0_i32, %c0_i32_0 : i32, i32
  }
  func.func @transform_5(%arg0: i32) -> (i32, i32) {
    %c0_i32 = arith.constant 0 : i32
    %c0_i32_0 = arith.constant 0 : i32
    return %arg0, %c0_i32 : i32, i32
  }
}

</mosaic_0001>

<llo_original>
// kernel: tpu_custom_call.1
$region0: #{tpu_custom_call.1}
  #allocation0 [shape = 'u32[]', space=smem, size = 0x4, offset = 0x4, fixed_abs, tag = 'smem constant byte address 0x4 - core index']
  #allocation1 [shape = 'u32[144,128]{1,0:T(1,128)}', space=vmem, size = 0x12000, scoped, tag = 'internal scratch']
  %s0 = inlined_call_operand.vmem [shape: bf16[2,3,64], index: 0, kind: input, shape index: {}]
  %s1 = inlined_call_operand.vmem [shape: bf16[128,3], index: 1, kind: input, shape index: {}]
  %s2 = inlined_call_operand.vmem [shape: f32[128,1], index: 2, kind: input, shape index: {}]
  %s3 = inlined_call_operand.vmem [shape: f32[128,128], index: 3, kind: input, shape index: {}]
  %s4 = inlined_call_operand.vmem [shape: f32[1,128], index: 4, kind: input, shape index: {}]
  %s5 = inlined_call_operand.hbm [shape: f32[2,128], index: 5, kind: output, shape index: {}]
  %s6 = sld [smem:[#allocation0]]
  $region30: #{tpu_custom_call.1} parent=0
    _
  %s8 = ssub.s32 1, %s6
  %s9 = scalar_select 0, %s8, %s6
  $region1: #{tpu_custom_call.1} parent=0
    #allocation2 [shape = 'u8[1024]{0}', space=vmem, size = 0x400, scoped, tag = 'output window, operand 0, single buffered']
    #allocation3 [shape = 's32[1]{0}', space=sflag, size = 0x4, scoped, tag = 'scoped memory for tpu_custom_call.1']
    %10 = vsyncpa [#allocation3], 0
    // Predicated region
    $region2: #{tpu_custom_call.1} parent=1 // pred_check
      _
    $region3: #{tpu_custom_call.1} parent=1 // pred_check_branch
      %12 = sbr.rel (0) target = $region5
    $region4: #{tpu_custom_call.1} parent=1 // pred_region
      _
    $region5: #{tpu_custom_call.1} parent=1 // pred_fallthru
      _
    // Predicated region
    $region6: #{tpu_custom_call.1} parent=1 // pred_check
      _
    $region7: #{tpu_custom_call.1} parent=1 // pred_check_branch
      %14 = sbr.rel (0) target = $region9
    $region8: #{tpu_custom_call.1} parent=1 // pred_region
      _
    $region9: #{tpu_custom_call.1} parent=1 // pred_fallthru
      _
    // Predicated region
    $region10: #{tpu_custom_call.1} parent=1 // pred_check
      _
    $region11: #{tpu_custom_call.1} parent=1 // pred_check_branch
      %16 = sbr.rel (0) target = $region13
    $region12: #{tpu_custom_call.1} parent=1 // pred_region
      _
    $region13: #{tpu_custom_call.1} parent=1 // pred_fallthru
      _
    // Predicated region
    $region14: #{tpu_custom_call.1} parent=1 // pred_check
      _
    $region15: #{tpu_custom_call.1} parent=1 // pred_check_branch
      %18 = sbr.rel (0) target = $region17
    $region16: #{tpu_custom_call.1} parent=1 // pred_region
      _
    $region17: #{tpu_custom_call.1} parent=1 // pred_fallthru
      _
    // Predicated region
    $region18: #{tpu_custom_call.1} parent=1 // pred_check
      _
    $region19: #{tpu_custom_call.1} parent=1 // pred_check_branch
      %20 = sbr.rel (0) target = $region21
    $region20: #{tpu_custom_call.1} parent=1 // pred_region
      _
    $region21: #{tpu_custom_call.1} parent=1 // pred_fallthru
      _
    %v22 = vld [vmem:[%s1] sm:$0xf]
    %v23 = vld [vmem:[%s1 + $0x4] sm:$0xf]
    %v24 = vld [vmem:[%s1 + $0x8] sm:$0xf]
    %v25 = vld [vmem:[%s1 + $0xc] sm:$0xf]
    %v26 = vld [vmem:[%s1 + $0x10] sm:$0xf]
    %v27 = vld [vmem:[%s1 + $0x14] sm:$0xf]
    %v28 = vld [vmem:[%s1 + $0x18] sm:$0xf]
    %v29 = vld [vmem:[%s1 + $0x1c] sm:$0xf]
    %v30 = vld [vmem:[%s1 + $0x20] sm:$0xf]
    %v31 = vld [vmem:[%s1 + $0x24] sm:$0xf]
    %v32 = vld [vmem:[%s1 + $0x28] sm:$0xf]
    %v33 = vld [vmem:[%s1 + $0x2c] sm:$0xf]
    %v34 = vld [vmem:[%s1 + $0x30] sm:$0xf]
    %v35 = vld [vmem:[%s1 + $0x34] sm:$0xf]
    %v36 = vld [vmem:[%s1 + $0x38] sm:$0xf]
    %v37 = vld [vmem:[%s1 + $0x3c] sm:$0xf]
    %v38 = vld [vmem:[%s2] sm:$0xff]
    %v39 = vld [vmem:[%s2 + $0x8] sm:$0xff]
    %v40 = vld [vmem:[%s2 + $0x10] sm:$0xff]
    %v41 = vld [vmem:[%s2 + $0x18] sm:$0xff]
    %v42 = vld [vmem:[%s2 + $0x20] sm:$0xff]
    %v43 = vld [vmem:[%s2 + $0x28] sm:$0xff]
    %v44 = vld [vmem:[%s2 + $0x30] sm:$0xff]
    %v45 = vld [vmem:[%s2 + $0x38] sm:$0xff]
    %v46 = vld [vmem:[%s2 + $0x40] sm:$0xff]
    %v47 = vld [vmem:[%s2 + $0x48] sm:$0xff]
    %v48 = vld [vmem:[%s2 + $0x50] sm:$0xff]
    %v49 = vld [vmem:[%s2 + $0x58] sm:$0xff]
    %v50 = vld [vmem:[%s2 + $0x60] sm:$0xff]
    %v51 = vld [vmem:[%s2 + $0x68] sm:$0xff]
    %v52 = vld [vmem:[%s2 + $0x70] sm:$0xff]
    %v53 = vld [vmem:[%s2 + $0x78] sm:$0xff]
    %v54 = vld [vmem:[%s0] sm:$0x3]
    %56 = vset.pattern.permute.xlu0 0
    %57 = vperm.xlu0 %56, %v38
    %v58 = vpop.permute.xlu0 %57
    %61 = vset.pattern.permute.xlu0 0
    %62 = vperm.xlu0 %61, %v39
    %v63 = vpop.permute.xlu0 %62
    %66 = vset.pattern.permute.xlu0 0
    %67 = vperm.xlu0 %66, %v40
    %v68 = vpop.permute.xlu0 %67
    %71 = vset.pattern.permute.xlu0 0
    %72 = vperm.xlu0 %71, %v41
    %v73 = vpop.permute.xlu0 %72
    %76 = vset.pattern.permute.xlu0 0
    %77 = vperm.xlu0 %76, %v42
    %v78 = vpop.permute.xlu0 %77
    %81 = vset.pattern.permute.xlu0 0
    %82 = vperm.xlu0 %81, %v43
    %v83 = vpop.permute.xlu0 %82
    %86 = vset.pattern.permute.xlu0 0
    %87 = vperm.xlu0 %86, %v44
    %v88 = vpop.permute.xlu0 %87
    %91 = vset.pattern.permute.xlu0 0
    %92 = vperm.xlu0 %91, %v45
    %v93 = vpop.permute.xlu0 %92
    %96 = vset.pattern.permute.xlu0 0
    %97 = vperm.xlu0 %96, %v46
    %v98 = vpop.permute.xlu0 %97
    %101 = vset.pattern.permute.xlu0 0
    %102 = vperm.xlu0 %101, %v47
    %v103 = vpop.permute.xlu0 %102
    %106 = vset.pattern.permute.xlu0 0
    %107 = vperm.xlu0 %106, %v48
    %v108 = vpop.permute.xlu0 %107
    %111 = vset.pattern.permute.xlu0 0
    %112 = vperm.xlu0 %111, %v49
    %v113 = vpop.permute.xlu0 %112
    %116 = vset.pattern.permute.xlu0 0
    %117 = vperm.xlu0 %116, %v50
    %v118 = vpop.permute.xlu0 %117
    %121 = vset.pattern.permute.xlu0 0
    %122 = vperm.xlu0 %121, %v51
    %v123 = vpop.permute.xlu0 %122
    %126 = vset.pattern.permute.xlu0 0
    %127 = vperm.xlu0 %126, %v52
    %v128 = vpop.permute.xlu0 %127
    %131 = vset.pattern.permute.xlu0 0
    %132 = vperm.xlu0 %131, %v53
    %v133 = vpop.permute.xlu0 %132
    %v151 = vunpack.c.l.b16 %v22
    %v152 = vunpack.c.l.b16 %v23
    %v153 = vunpack.c.l.b16 %v24
    %v154 = vunpack.c.l.b16 %v25
    %v155 = vunpack.c.l.b16 %v26
    %v156 = vunpack.c.l.b16 %v27
    %v157 = vunpack.c.l.b16 %v28
    %v158 = vunpack.c.l.b16 %v29
    %v159 = vunpack.c.l.b16 %v30
    %v160 = vunpack.c.l.b16 %v31
    %v161 = vunpack.c.l.b16 %v32
    %v162 = vunpack.c.l.b16 %v33
    %v163 = vunpack.c.l.b16 %v34
    %v164 = vunpack.c.l.b16 %v35
    %v165 = vunpack.c.l.b16 %v36
    %v166 = vunpack.c.l.b16 %v37
    %v167 = vpack.c.b16 %v152, %v151
    %v168 = vpack.c.b16 %v154, %v153
    %v169 = vpack.c.b16 %v156, %v155
    %v170 = vpack.c.b16 %v158, %v157
    %v171 = vpack.c.b16 %v160, %v159
    %v172 = vpack.c.b16 %v162, %v161
    %v173 = vpack.c.b16 %v164, %v163
    %v174 = vpack.c.b16 %v166, %v165
    %vm175 = vcmask 23552
    %v177 = vsel %vm175, %v167, 0
    %v180 = vsel %vm175, %v168, 0
    %v183 = vsel %vm175, %v169, 0
    %v186 = vsel %vm175, %v170, 0
    %v189 = vsel %vm175, %v171, 0
    %v192 = vsel %vm175, %v172, 0
    %v195 = vsel %vm175, %v173, 0
    %v198 = vsel %vm175, %v174, 0
    %vm200 = vcmask 1040384
    %vm201 = vcmask 1041408
    %v202 = vsel %vm200, 4294967295, 65535
    %v203 = vsel %vm201, %v202, 0
    %v205 = vand.u32 %v54, %v203
    %207 = vmatprep.subr.bf16.mxu0 0
    %208 = vmatpush1.bf16.msra.mxu0 0
    %209 = vmatprep.subr.bf16.mxu0 0
    %210 = vmatpush1.bf16.msra.mxu0 0
    %211 = vmatprep.subr.bf16.mxu0 0
    %212 = vmatpush1.bf16.msra.mxu0 0
    %213 = vmatprep.subr.bf16.mxu0 0
    %214 = vmatpush1.bf16.msra.mxu0 0
    %215 = vmatprep.subr.bf16.mxu0 0
    %216 = vmatpush1.bf16.msra.mxu0 0
    %217 = vmatprep.subr.bf16.mxu0 0
    %218 = vmatpush1.bf16.msra.mxu0 0
    %219 = vmatprep.subr.bf16.mxu0 0
    %220 = vmatpush1.bf16.msra.mxu0 0
    %221 = vmatprep.subr.bf16.mxu0 0
    %222 = vmatpush1.bf16.msra.mxu0 %v205
    %223 = vmatprep.subr.bf16.mxu0 0
    %224 = vmatpush2.bf16.msra.mxu0 0
    %225 = vmatprep.subr.bf16.mxu0 0
    %226 = vmatpush2.bf16.msra.mxu0 0
    %227 = vmatprep.subr.bf16.mxu0 0
    %228 = vmatpush2.bf16.msra.mxu0 0
    %229 = vmatprep.subr.bf16.mxu0 0
    %230 = vmatpush2.bf16.msra.mxu0 0
    %231 = vmatprep.subr.bf16.mxu0 0
    %232 = vmatpush2.bf16.msra.mxu0 0
    %233 = vmatprep.subr.bf16.mxu0 0
    %234 = vmatpush2.bf16.msra.mxu0 0
    %235 = vmatprep.subr.bf16.mxu0 0
    %236 = vmatpush2.bf16.msra.mxu0 0
    %237 = vmatprep.subr.bf16.mxu0 0
    %238 = vmatpush2.bf16.msra.mxu0 0
    %239 = vmatprep.mubr.bf16.mxu0 0
    %240 = vmatmul.mubr.bf16.gmra.mxu0 %v177
    %v241 = vpop.f32.mrf.mxu0
    %v242 = vadd.f32 %v58, %v241
    %v243 = vpop.f32.mrf.mxu0
    %v244 = vpop.f32.mrf.mxu0
    %v245 = vadd.f32 %v63, %v244
    %v246 = vpop.f32.mrf.mxu0
    %247 = vmatprep.mubr.bf16.mxu0 0
    %248 = vmatmul.mubr.bf16.gmra.mxu0 %v180
    %v249 = vpop.f32.mrf.mxu0
    %v250 = vadd.f32 %v68, %v249
    %v251 = vpop.f32.mrf.mxu0
    %v252 = vpop.f32.mrf.mxu0
    %v253 = vadd.f32 %v73, %v252
    %v254 = vpop.f32.mrf.mxu0
    %255 = vmatprep.mubr.bf16.mxu0 0
    %256 = vmatmul.mubr.bf16.gmra.mxu0 %v183
    %v257 = vpop.f32.mrf.mxu0
    %v258 = vadd.f32 %v78, %v257
    %v259 = vpop.f32.mrf.mxu0
    %v260 = vpop.f32.mrf.mxu0
    %v261 = vadd.f32 %v83, %v260
    %v262 = vpop.f32.mrf.mxu0
    %263 = vmatprep.mubr.bf16.mxu0 0
    %264 = vmatmul.mubr.bf16.gmra.mxu0 %v186
    %v265 = vpop.f32.mrf.mxu0
    %v266 = vadd.f32 %v88, %v265
    %v267 = vpop.f32.mrf.mxu0
    %v268 = vpop.f32.mrf.mxu0
    %v269 = vadd.f32 %v93, %v268
    %v270 = vpop.f32.mrf.mxu0
    %271 = vmatprep.mubr.bf16.mxu0 0
    %272 = vmatmul.mubr.bf16.gmra.mxu0 %v189
    %v273 = vpop.f32.mrf.mxu0
    %v274 = vadd.f32 %v98, %v273
    %v275 = vpop.f32.mrf.mxu0
    %v276 = vpop.f32.mrf.mxu0
    %v277 = vadd.f32 %v103, %v276
    %v278 = vpop.f32.mrf.mxu0
    %279 = vmatprep.mubr.bf16.mxu0 0
    %280 = vmatmul.mubr.bf16.gmra.mxu0 %v192
    %v281 = vpop.f32.mrf.mxu0
    %v282 = vadd.f32 %v108, %v281
    %v283 = vpop.f32.mrf.mxu0
    %v284 = vpop.f32.mrf.mxu0
    %v285 = vadd.f32 %v113, %v284
    %v286 = vpop.f32.mrf.mxu0
    %287 = vmatprep.mubr.bf16.mxu0 0
    %288 = vmatmul.mubr.bf16.gmra.mxu0 %v195
    %v289 = vpop.f32.mrf.mxu0
    %v290 = vadd.f32 %v118, %v289
    %v291 = vpop.f32.mrf.mxu0
    %v292 = vpop.f32.mrf.mxu0
    %v293 = vadd.f32 %v123, %v292
    %v294 = vpop.f32.mrf.mxu0
    %295 = vmatprep.mubr.bf16.mxu0 0
    %296 = vmatmul.mubr.bf16.gmra.mxu0 %v198
    %v297 = vpop.f32.mrf.mxu0
    %v298 = vadd.f32 %v128, %v297
    %v299 = vpop.f32.mrf.mxu0
    %v300 = vpop.f32.mrf.mxu0
    %v301 = vadd.f32 %v133, %v300
    %v302 = vpop.f32.mrf.mxu0
    %303 = vdwg.mxu0
    %v304 = vmax.f32 %v242, 0.0
    %v305 = vmax.f32 %v245, 0.0
    %v306 = vmax.f32 %v250, 0.0
    %v307 = vmax.f32 %v253, 0.0
    %v308 = vmax.f32 %v258, 0.0
    %v309 = vmax.f32 %v261, 0.0
    %v310 = vmax.f32 %v266, 0.0
    %v311 = vmax.f32 %v269, 0.0
    %v312 = vmax.f32 %v274, 0.0
    %v313 = vmax.f32 %v277, 0.0
    %v314 = vmax.f32 %v282, 0.0
    %v315 = vmax.f32 %v285, 0.0
    %v316 = vmax.f32 %v290, 0.0
    %v317 = vmax.f32 %v293, 0.0
    %v318 = vmax.f32 %v298, 0.0
    %v319 = vmax.f32 %v301, 0.0
    %vm320 = vcmask 523264
    %v321 = vsel %vm320, %v304, 0.0
    %322 = vadd.xlane.f32.xlu0 %v321
    %v323 = vpop.xlane.xlu0 %322
    %v324 = vsel %vm320, %v305, 0.0
    %325 = vadd.xlane.f32.xlu0 %v324
    %v326 = vpop.xlane.xlu0 %325
    %v327 = vsel %vm320, %v306, 0.0
    %328 = vadd.xlane.f32.xlu0 %v327
    %v329 = vpop.xlane.xlu0 %328
    %v330 = vsel %vm320, %v307, 0.0
    %331 = vadd.xlane.f32.xlu0 %v330
    %v332 = vpop.xlane.xlu0 %331
    %v333 = vsel %vm320, %v308, 0.0
    %334 = vadd.xlane.f32.xlu0 %v333
    %v335 = vpop.xlane.xlu0 %334
    %v336 = vsel %vm320, %v309, 0.0
    %337 = vadd.xlane.f32.xlu0 %v336
    %v338 = vpop.xlane.xlu0 %337
    %v339 = vsel %vm320, %v310, 0.0
    %340 = vadd.xlane.f32.xlu0 %v339
    %v341 = vpop.xlane.xlu0 %340
    %v342 = vsel %vm320, %v311, 0.0
    %343 = vadd.xlane.f32.xlu0 %v342
    %v344 = vpop.xlane.xlu0 %343
    %v345 = vsel %vm320, %v312, 0.0
    %346 = vadd.xlane.f32.xlu0 %v345
    %v347 = vpop.xlane.xlu0 %346
    %v348 = vsel %vm320, %v313, 0.0
    %349 = vadd.xlane.f32.xlu0 %v348
    %v350 = vpop.xlane.xlu0 %349
    %v351 = vsel %vm320, %v314, 0.0
    %352 = vadd.xlane.f32.xlu0 %v351
    %v353 = vpop.xlane.xlu0 %352
    %v354 = vsel %vm320, %v315, 0.0
    %355 = vadd.xlane.f32.xlu0 %v354
    %v356 = vpop.xlane.xlu0 %355
    %v357 = vsel %vm320, %v316, 0.0
    %358 = vadd.xlane.f32.xlu0 %v357
    %v359 = vpop.xlane.xlu0 %358
    %v360 = vsel %vm320, %v317, 0.0
    %361 = vadd.xlane.f32.xlu0 %v360
    %v362 = vpop.xlane.xlu0 %361
    %v363 = vsel %vm320, %v318, 0.0
    %364 = vadd.xlane.f32.xlu0 %v363
    %v365 = vpop.xlane.xlu0 %364
    %v366 = vsel %vm320, %v319, 0.0
    %367 = vadd.xlane.f32.xlu0 %v366
    %v368 = vpop.xlane.xlu0 %367
    %v369 = vadd.f32 %v323, 0.0
    %v370 = vadd.f32 %v326, 0.0
    %v371 = vadd.f32 %v329, 0.0
    %v372 = vadd.f32 %v332, 0.0
    %v373 = vadd.f32 %v335, 0.0
    %v374 = vadd.f32 %v338, 0.0
    %v375 = vadd.f32 %v341, 0.0
    %v376 = vadd.f32 %v344, 0.0
    %v377 = vadd.f32 %v347, 0.0
    %v378 = vadd.f32 %v350, 0.0
    %v379 = vadd.f32 %v353, 0.0
    %v380 = vadd.f32 %v356, 0.0
    %v381 = vadd.f32 %v359, 0.0
    %v382 = vadd.f32 %v362, 0.0
    %v383 = vadd.f32 %v365, 0.0
    %v384 = vadd.f32 %v368, 0.0
    %v385 = vld [vmem:[%s3] sm:$0xff]
    %v386 = vld [vmem:[%s3 + $0x8] sm:$0xff]
    %v387 = vld [vmem:[%s3 + $0x10] sm:$0xff]
    %v388 = vld [vmem:[%s3 + $0x18] sm:$0xff]
    %v389 = vld [vmem:[%s3 + $0x20] sm:$0xff]
    %v390 = vld [vmem:[%s3 + $0x28] sm:$0xff]
    %v391 = vld [vmem:[%s3 + $0x30] sm:$0xff]
    %v392 = vld [vmem:[%s3 + $0x38] sm:$0xff]
    %v393 = vld [vmem:[%s3 + $0x40] sm:$0xff]
    %v394 = vld [vmem:[%s3 + $0x48] sm:$0xff]
    %v395 = vld [vmem:[%s3 + $0x50] sm:$0xff]
    %v396 = vld [vmem:[%s3 + $0x58] sm:$0xff]
    %v397 = vld [vmem:[%s3 + $0x60] sm:$0xff]
    %v398 = vld [vmem:[%s3 + $0x68] sm:$0xff]
    %v399 = vld [vmem:[%s3 + $0x70] sm:$0xff]
    %v400 = vld [vmem:[%s3 + $0x78] sm:$0xff]
    %401 = vxpose.xlu0.b32.start [1/16] %v369, 128
    %402 = vxpose.xlu0.b32.cont [2/16] %v370, 128
    %403 = vxpose.xlu0.b32.cont [3/16] %v371, 128
    %404 = vxpose.xlu0.b32.cont [4/16] %v372, 128
    %405 = vxpose.xlu0.b32.cont [5/16] %v373, 128
    %406 = vxpose.xlu0.b32.cont [6/16] %v374, 128
    %407 = vxpose.xlu0.b32.cont [7/16] %v375, 128
    %408 = vxpose.xlu0.b32.cont [8/16] %v376, 128
    %409 = vxpose.xlu0.b32.cont [9/16] %v377, 128
    %410 = vxpose.xlu0.b32.cont [10/16] %v378, 128
    %411 = vxpose.xlu0.b32.cont [11/16] %v379, 128
    %412 = vxpose.xlu0.b32.cont [12/16] %v380, 128
    %413 = vxpose.xlu0.b32.cont [13/16] %v381, 128
    %414 = vxpose.xlu0.b32.cont [14/16] %v382, 128
    %415 = vxpose.xlu0.b32.cont [15/16] %v383, 128
    %416 = vxpose.xlu0.b32.end [16/16] %v384, 128
    %v417 = vpop.trf.xlu0
    %v418 = vpop.trf.xlu0
    %v419 = vpop.trf.xlu0
    %v420 = vpop.trf.xlu0
    %v421 = vpop.trf.xlu0
    %v422 = vpop.trf.xlu0
    %v423 = vpop.trf.xlu0
    %v424 = vpop.trf.xlu0
    %v425 = vpop.trf.xlu0
    %v426 = vpop.trf.xlu0
    %v427 = vpop.trf.xlu0
    %v428 = vpop.trf.xlu0
    %v429 = vpop.trf.xlu0
    %v430 = vpop.trf.xlu0
    %v431 = vpop.trf.xlu0
    %v432 = vpop.trf.xlu0
    %433 = vmatprep.subr.mxu0 0.0
    %434 = vmatpush1.msra.mxu0 %v400
    %435 = vmatprep.subr.mxu0 0.0
    %436 = vmatpush1.msra.mxu0 %v399
    %437 = vmatprep.subr.mxu0 0.0
    %438 = vmatpush1.msra.mxu0 %v398
    %439 = vmatprep.subr.mxu0 0.0
    %440 = vmatpush1.msra.mxu0 %v397
    %441 = vmatprep.subr.mxu0 0.0
    %442 = vmatpush1.msra.mxu0 %v396
    %443 = vmatprep.subr.mxu0 0.0
    %444 = vmatpush1.msra.mxu0 %v395
    %445 = vmatprep.subr.mxu0 0.0
    %446 = vmatpush1.msra.mxu0 %v394
    %447 = vmatprep.subr.mxu0 0.0
    %448 = vmatpush1.msra.mxu0 %v393
    %449 = vmatprep.subr.mxu0 0.0
    %450 = vmatpush1.msra.mxu0 %v392
    %451 = vmatprep.subr.mxu0 0.0
    %452 = vmatpush1.msra.mxu0 %v391
    %453 = vmatprep.subr.mxu0 0.0
    %454 = vmatpush1.msra.mxu0 %v390
    %455 = vmatprep.subr.mxu0 0.0
    %456 = vmatpush1.msra.mxu0 %v389
    %457 = vmatprep.subr.mxu0 0.0
    %458 = vmatpush1.msra.mxu0 %v388
    %459 = vmatprep.subr.mxu0 0.0
    %460 = vmatpush1.msra.mxu0 %v387
    %461 = vmatprep.subr.mxu0 0.0
    %462 = vmatpush1.msra.mxu0 %v386
    %463 = vmatprep.subr.mxu0 0.0
    %464 = vmatpush1.msra.mxu0 %v385
    %465 = vmatprep.subr.mxu0 0.0
    %466 = vmatpush2.msra.mxu0 0.0
    %467 = vmatprep.subr.mxu0 0.0
    %468 = vmatpush2.msra.mxu0 0.0
    %469 = vmatprep.subr.mxu0 0.0
    %470 = vmatpush2.msra.mxu0 0.0
    %471 = vmatprep.subr.mxu0 0.0
    %472 = vmatpush2.msra.mxu0 0.0
    %473 = vmatprep.subr.mxu0 0.0
    %474 = vmatpush2.msra.mxu0 0.0
    %475 = vmatprep.subr.mxu0 0.0
    %476 = vmatpush2.msra.mxu0 0.0
    %477 = vmatprep.subr.mxu0 0.0
    %478 = vmatpush2.msra.mxu0 0.0
    %479 = vmatprep.subr.mxu0 0.0
    %480 = vmatpush2.msra.mxu0 0.0
    %481 = vmatprep.subr.mxu0 0.0
    %482 = vmatpush2.msra.mxu0 0.0
    %483 = vmatprep.subr.mxu0 0.0
    %484 = vmatpush2.msra.mxu0 0.0
    %485 = vmatprep.subr.mxu0 0.0
    %486 = vmatpush2.msra.mxu0 0.0
    %487 = vmatprep.subr.mxu0 0.0
    %488 = vmatpush2.msra.mxu0 0.0
    %489 = vmatprep.subr.mxu0 0.0
    %490 = vmatpush2.msra.mxu0 0.0
    %491 = vmatprep.subr.mxu0 0.0
    %492 = vmatpush2.msra.mxu0 0.0
    %493 = vmatprep.subr.mxu0 0.0
    %494 = vmatpush2.msra.mxu0 0.0
    %495 = vmatprep.subr.mxu0 0.0
    %496 = vmatpush2.msra.mxu0 0.0
    %497 = vmatprep.mubr.f32.mxu0 0.0
    %498 = vmatmul.mubr.f32.gmra.mxu0 %v417
    %v499 = vpop.f32.mrf.mxu0
    %v500 = vadd.f32 0.0, %v499
    %v501 = vpop.f32.mrf.mxu0
    %502 = vdwg.mxu0
    %s503 = scalar_lea.vmem %s0, 2
    %v504 = vld [vmem:[%s503] sm:$0x3]
    %v506 = vand.u32 %v504, %v203
    %508 = vmatprep.subr.bf16.mxu0 0
    %509 = vmatpush1.bf16.msra.mxu0 0
    %510 = vmatprep.subr.bf16.mxu0 0
    %511 = vmatpush1.bf16.msra.mxu0 0
    %512 = vmatprep.subr.bf16.mxu0 0
    %513 = vmatpush1.bf16.msra.mxu0 0
    %514 = vmatprep.subr.bf16.mxu0 0
    %515 = vmatpush1.bf16.msra.mxu0 0
    %516 = vmatprep.subr.bf16.mxu0 0
    %517 = vmatpush1.bf16.msra.mxu0 0
    %518 = vmatprep.subr.bf16.mxu0 0
    %519 = vmatpush1.bf16.msra.mxu0 0
    %520 = vmatprep.subr.bf16.mxu0 0
    %521 = vmatpush1.bf16.msra.mxu0 0
    %522 = vmatprep.subr.bf16.mxu0 0
    %523 = vmatpush1.bf16.msra.mxu0 %v506
    %524 = vmatprep.subr.bf16.mxu0 0
    %525 = vmatpush2.bf16.msra.mxu0 0
    %526 = vmatprep.subr.bf16.mxu0 0
    %527 = vmatpush2.bf16.msra.mxu0 0
    %528 = vmatprep.subr.bf16.mxu0 0
    %529 = vmatpush2.bf16.msra.mxu0 0
    %530 = vmatprep.subr.bf16.mxu0 0
    %531 = vmatpush2.bf16.msra.mxu0 0
    %532 = vmatprep.subr.bf16.mxu0 0
    %533 = vmatpush2.bf16.msra.mxu0 0
    %534 = vmatprep.subr.bf16.mxu0 0
    %535 = vmatpush2.bf16.msra.mxu0 0
    %536 = vmatprep.subr.bf16.mxu0 0
    %537 = vmatpush2.bf16.msra.mxu0 0
    %538 = vmatprep.subr.bf16.mxu0 0
    %539 = vmatpush2.bf16.msra.mxu0 0
    %540 = vmatprep.mubr.bf16.mxu0 0
    %541 = vmatmul.mubr.bf16.gmra.mxu0 %v177
    %v542 = vpop.f32.mrf.mxu0
    %v543 = vadd.f32 %v58, %v542
    %v544 = vpop.f32.mrf.mxu0
    %v545 = vpop.f32.mrf.mxu0
    %v546 = vadd.f32 %v63, %v545
    %v547 = vpop.f32.mrf.mxu0
    %548 = vmatprep.mubr.bf16.mxu0 0
    %549 = vmatmul.mubr.bf16.gmra.mxu0 %v180
    %v550 = vpop.f32.mrf.mxu0
    %v551 = vadd.f32 %v68, %v550
    %v552 = vpop.f32.mrf.mxu0
    %v553 = vpop.f32.mrf.mxu0
    %v554 = vadd.f32 %v73, %v553
    %v555 = vpop.f32.mrf.mxu0
    %556 = vmatprep.mubr.bf16.mxu0 0
    %557 = vmatmul.mubr.bf16.gmra.mxu0 %v183
    %v558 = vpop.f32.mrf.mxu0
    %v559 = vadd.f32 %v78, %v558
    %v560 = vpop.f32.mrf.mxu0
    %v561 = vpop.f32.mrf.mxu0
    %v562 = vadd.f32 %v83, %v561
    %v563 = vpop.f32.mrf.mxu0
    %564 = vmatprep.mubr.bf16.mxu0 0
    %565 = vmatmul.mubr.bf16.gmra.mxu0 %v186
    %v566 = vpop.f32.mrf.mxu0
    %v567 = vadd.f32 %v88, %v566
    %v568 = vpop.f32.mrf.mxu0
    %v569 = vpop.f32.mrf.mxu0
    %v570 = vadd.f32 %v93, %v569
    %v571 = vpop.f32.mrf.mxu0
    %572 = vmatprep.mubr.bf16.mxu0 0
    %573 = vmatmul.mubr.bf16.gmra.mxu0 %v189
    %v574 = vpop.f32.mrf.mxu0
    %v575 = vadd.f32 %v98, %v574
    %v576 = vpop.f32.mrf.mxu0
    %v577 = vpop.f32.mrf.mxu0
    %v578 = vadd.f32 %v103, %v577
    %v579 = vpop.f32.mrf.mxu0
    %580 = vmatprep.mubr.bf16.mxu0 0
    %581 = vmatmul.mubr.bf16.gmra.mxu0 %v192
    %v582 = vpop.f32.mrf.mxu0
    %v583 = vadd.f32 %v108, %v582
    %v584 = vpop.f32.mrf.mxu0
    %v585 = vpop.f32.mrf.mxu0
    %v586 = vadd.f32 %v113, %v585
    %v587 = vpop.f32.mrf.mxu0
    %588 = vmatprep.mubr.bf16.mxu0 0
    %589 = vmatmul.mubr.bf16.gmra.mxu0 %v195
    %v590 = vpop.f32.mrf.mxu0
    %v591 = vadd.f32 %v118, %v590
    %v592 = vpop.f32.mrf.mxu0
    %v593 = vpop.f32.mrf.mxu0
    %v594 = vadd.f32 %v123, %v593
    %v595 = vpop.f32.mrf.mxu0
    %596 = vmatprep.mubr.bf16.mxu0 0
    %597 = vmatmul.mubr.bf16.gmra.mxu0 %v198
    %v598 = vpop.f32.mrf.mxu0
    %v599 = vadd.f32 %v128, %v598
    %v600 = vpop.f32.mrf.mxu0
    %v601 = vpop.f32.mrf.mxu0
    %v602 = vadd.f32 %v133, %v601
    %v603 = vpop.f32.mrf.mxu0
    %604 = vdwg.mxu0
    %v605 = vmax.f32 %v543, 0.0
    %v606 = vmax.f32 %v546, 0.0
    %v607 = vmax.f32 %v551, 0.0
    %v608 = vmax.f32 %v554, 0.0
    %v609 = vmax.f32 %v559, 0.0
    %v610 = vmax.f32 %v562, 0.0
    %v611 = vmax.f32 %v567, 0.0
    %v612 = vmax.f32 %v570, 0.0
    %v613 = vmax.f32 %v575, 0.0
    %v614 = vmax.f32 %v578, 0.0
    %v615 = vmax.f32 %v583, 0.0
    %v616 = vmax.f32 %v586, 0.0
    %v617 = vmax.f32 %v591, 0.0
    %v618 = vmax.f32 %v594, 0.0
    %v619 = vmax.f32 %v599, 0.0
    %v620 = vmax.f32 %v602, 0.0
    %v621 = vsel %vm320, %v605, 0.0
    %622 = vadd.xlane.f32.xlu0 %v621
    %v623 = vpop.xlane.xlu0 %622
    %v624 = vsel %vm320, %v606, 0.0
    %625 = vadd.xlane.f32.xlu0 %v624
    %v626 = vpop.xlane.xlu0 %625
    %v627 = vsel %vm320, %v607, 0.0
    %628 = vadd.xlane.f32.xlu0 %v627
    %v629 = vpop.xlane.xlu0 %628
    %v630 = vsel %vm320, %v608, 0.0
    %631 = vadd.xlane.f32.xlu0 %v630
    %v632 = vpop.xlane.xlu0 %631
    %v633 = vsel %vm320, %v609, 0.0
    %634 = vadd.xlane.f32.xlu0 %v633
    %v635 = vpop.xlane.xlu0 %634
    %v636 = vsel %vm320, %v610, 0.0
    %637 = vadd.xlane.f32.xlu0 %v636
    %v638 = vpop.xlane.xlu0 %637
    %v639 = vsel %vm320, %v611, 0.0
    %640 = vadd.xlane.f32.xlu0 %v639
    %v641 = vpop.xlane.xlu0 %640
    %v642 = vsel %vm320, %v612, 0.0
    %643 = vadd.xlane.f32.xlu0 %v642
    %v644 = vpop.xlane.xlu0 %643
    %v645 = vsel %vm320, %v613, 0.0
    %646 = vadd.xlane.f32.xlu0 %v645
    %v647 = vpop.xlane.xlu0 %646
    %v648 = vsel %vm320, %v614, 0.0
    %649 = vadd.xlane.f32.xlu0 %v648
    %v650 = vpop.xlane.xlu0 %649
    %v651 = vsel %vm320, %v615, 0.0
    %652 = vadd.xlane.f32.xlu0 %v651
    %v653 = vpop.xlane.xlu0 %652
    %v654 = vsel %vm320, %v616, 0.0
    %655 = vadd.xlane.f32.xlu0 %v654
    %v656 = vpop.xlane.xlu0 %655
    %v657 = vsel %vm320, %v617, 0.0
    %658 = vadd.xlane.f32.xlu0 %v657
    %v659 = vpop.xlane.xlu0 %658
    %v660 = vsel %vm320, %v618, 0.0
    %661 = vadd.xlane.f32.xlu0 %v660
    %v662 = vpop.xlane.xlu0 %661
    %v663 = vsel %vm320, %v619, 0.0
    %664 = vadd.xlane.f32.xlu0 %v663
    %v665 = vpop.xlane.xlu0 %664
    %v666 = vsel %vm320, %v620, 0.0
    %667 = vadd.xlane.f32.xlu0 %v666
    %v668 = vpop.xlane.xlu0 %667
    %v669 = vadd.f32 %v623, 0.0
    %v670 = vadd.f32 %v626, 0.0
    %v671 = vadd.f32 %v629, 0.0
    %v672 = vadd.f32 %v632, 0.0
    %v673 = vadd.f32 %v635, 0.0
    %v674 = vadd.f32 %v638, 0.0
    %v675 = vadd.f32 %v641, 0.0
    %v676 = vadd.f32 %v644, 0.0
    %v677 = vadd.f32 %v647, 0.0
    %v678 = vadd.f32 %v650, 0.0
    %v679 = vadd.f32 %v653, 0.0
    %v680 = vadd.f32 %v656, 0.0
    %v681 = vadd.f32 %v659, 0.0
    %v682 = vadd.f32 %v662, 0.0
    %v683 = vadd.f32 %v665, 0.0
    %v684 = vadd.f32 %v668, 0.0
    %685 = vxpose.xlu0.b32.start [1/16] %v669, 128
    %686 = vxpose.xlu0.b32.cont [2/16] %v670, 128
    %687 = vxpose.xlu0.b32.cont [3/16] %v671, 128
    %688 = vxpose.xlu0.b32.cont [4/16] %v672, 128
    %689 = vxpose.xlu0.b32.cont [5/16] %v673, 128
    %690 = vxpose.xlu0.b32.cont [6/16] %v674, 128
    %691 = vxpose.xlu0.b32.cont [7/16] %v675, 128
    %692 = vxpose.xlu0.b32.cont [8/16] %v676, 128
    %693 = vxpose.xlu0.b32.cont [9/16] %v677, 128
    %694 = vxpose.xlu0.b32.cont [10/16] %v678, 128
    %695 = vxpose.xlu0.b32.cont [11/16] %v679, 128
    %696 = vxpose.xlu0.b32.cont [12/16] %v680, 128
    %697 = vxpose.xlu0.b32.cont [13/16] %v681, 128
    %698 = vxpose.xlu0.b32.cont [14/16] %v682, 128
    %699 = vxpose.xlu0.b32.cont [15/16] %v683, 128
    %700 = vxpose.xlu0.b32.end [16/16] %v684, 128
    %v701 = vpop.trf.xlu0
    %v702 = vpop.trf.xlu0
    %v703 = vpop.trf.xlu0
    %v704 = vpop.trf.xlu0
    %v705 = vpop.trf.xlu0
    %v706 = vpop.trf.xlu0
    %v707 = vpop.trf.xlu0
    %v708 = vpop.trf.xlu0
    %v709 = vpop.trf.xlu0
    %v710 = vpop.trf.xlu0
    %v711 = vpop.trf.xlu0
    %v712 = vpop.trf.xlu0
    %v713 = vpop.trf.xlu0
    %v714 = vpop.trf.xlu0
    %v715 = vpop.trf.xlu0
    %v716 = vpop.trf.xlu0
    %717 = vmatprep.subr.mxu0 0.0
    %718 = vmatpush1.msra.mxu0 %v400
    %719 = vmatprep.subr.mxu0 0.0
    %720 = vmatpush1.msra.mxu0 %v399
    %721 = vmatprep.subr.mxu0 0.0
    %722 = vmatpush1.msra.mxu0 %v398
    %723 = vmatprep.subr.mxu0 0.0
    %724 = vmatpush1.msra.mxu0 %v397
    %725 = vmatprep.subr.mxu0 0.0
    %726 = vmatpush1.msra.mxu0 %v396
    %727 = vmatprep.subr.mxu0 0.0
    %728 = vmatpush1.msra.mxu0 %v395
    %729 = vmatprep.subr.mxu0 0.0
    %730 = vmatpush1.msra.mxu0 %v394
    %731 = vmatprep.subr.mxu0 0.0
    %732 = vmatpush1.msra.mxu0 %v393
    %733 = vmatprep.subr.mxu0 0.0
    %734 = vmatpush1.msra.mxu0 %v392
    %735 = vmatprep.subr.mxu0 0.0
    %736 = vmatpush1.msra.mxu0 %v391
    %737 = vmatprep.subr.mxu0 0.0
    %738 = vmatpush1.msra.mxu0 %v390
    %739 = vmatprep.subr.mxu0 0.0
    %740 = vmatpush1.msra.mxu0 %v389
    %741 = vmatprep.subr.mxu0 0.0
    %742 = vmatpush1.msra.mxu0 %v388
    %743 = vmatprep.subr.mxu0 0.0
    %744 = vmatpush1.msra.mxu0 %v387
    %745 = vmatprep.subr.mxu0 0.0
    %746 = vmatpush1.msra.mxu0 %v386
    %747 = vmatprep.subr.mxu0 0.0
    %748 = vmatpush1.msra.mxu0 %v385
    %749 = vmatprep.subr.mxu0 0.0
    %750 = vmatpush2.msra.mxu0 0.0
    %751 = vmatprep.subr.mxu0 0.0
    %752 = vmatpush2.msra.mxu0 0.0
    %753 = vmatprep.subr.mxu0 0.0
    %754 = vmatpush2.msra.mxu0 0.0
    %755 = vmatprep.subr.mxu0 0.0
    %756 = vmatpush2.msra.mxu0 0.0
    %757 = vmatprep.subr.mxu0 0.0
    %758 = vmatpush2.msra.mxu0 0.0
    %759 = vmatprep.subr.mxu0 0.0
    %760 = vmatpush2.msra.mxu0 0.0
    %761 = vmatprep.subr.mxu0 0.0
    %762 = vmatpush2.msra.mxu0 0.0
    %763 = vmatprep.subr.mxu0 0.0
    %764 = vmatpush2.msra.mxu0 0.0
    %765 = vmatprep.subr.mxu0 0.0
    %766 = vmatpush2.msra.mxu0 0.0
    %767 = vmatprep.subr.mxu0 0.0
    %768 = vmatpush2.msra.mxu0 0.0
    %769 = vmatprep.subr.mxu0 0.0
    %770 = vmatpush2.msra.mxu0 0.0
    %771 = vmatprep.subr.mxu0 0.0
    %772 = vmatpush2.msra.mxu0 0.0
    %773 = vmatprep.subr.mxu0 0.0
    %774 = vmatpush2.msra.mxu0 0.0
    %775 = vmatprep.subr.mxu0 0.0
    %776 = vmatpush2.msra.mxu0 0.0
    %777 = vmatprep.subr.mxu0 0.0
    %778 = vmatpush2.msra.mxu0 0.0
    %779 = vmatprep.subr.mxu0 0.0
    %780 = vmatpush2.msra.mxu0 0.0
    %781 = vmatprep.mubr.f32.mxu0 0.0
    %782 = vmatmul.mubr.f32.gmra.mxu0 %v701
    %v783 = vpop.f32.mrf.mxu0
    %v784 = vadd.f32 0.0, %v783
    %v785 = vpop.f32.mrf.mxu0
    %786 = vdwg.mxu0
    %v788 = vrot.slane %v784, 7
    %v790 = vsel %vm200, %v500, %v788
    %v791 = vld [vmem:[%s4] sm:$0x1]
    %v793 = vlaneseq
    %v794 = vshrl.u32 %v793, 7
    %v795 = vsub.s32 0, %v794
    %v796 = vrot.slane %v791, %v795
    %v798 = vadd.f32 %v790, %v796
    %v799 = vmul.f32 %v798, %v798
    %v800 = vsel %vm201, %v799, 0.0
    %801 = vadd.xlane.f32.xlu0 %v800
    %v802 = vpop.xlane.xlu0 %801
    %v803 = vmax.f32 %v802, 1e-24
    %v804 = vrsqrt.pop %v803
    %v805 = vmul.f32 %v798, %v804
    %806 = vst [vmem:[#allocation2] sm:$0x3] %v805
    // Predicated region
    $region22: #{tpu_custom_call.1} parent=1 // pred_check
      _
    $region23: #{tpu_custom_call.1} parent=1 // pred_check_branch
      %808 = sbr.rel (0) target = $region25
    $region24: #{tpu_custom_call.1} parent=1 // pred_region
      %s810 = ssub.s32 32, 32
      %811 = vsyncadd [#allocation3], %s810
      %s813 = sshll.u32 [#allocation2], 4
      %s814 = int_to_ptr.vmem [resolvable:$true] %s813
      %816 = dma.vmem_to_hbm [thread:$0]  %s814, 32, %s5, [#allocation3]
    $region25: #{tpu_custom_call.1} parent=1 // pred_fallthru
      _
    // Predicated region
    $region26: #{tpu_custom_call.1} parent=1 // pred_check
      _
    $region27: #{tpu_custom_call.1} parent=1 // pred_check_branch
      %818 = sbr.rel (0) target = $region29
    $region28: #{tpu_custom_call.1} parent=1 // pred_region
      %819 = dma.done [#allocation3], 32
    $region29: #{tpu_custom_call.1} parent=1 // pred_fallthru
      _
    %820 = vsyncpa [#allocation3], 1

</llo_original>
